<compile_context>
chip_gen: v7x
topology: tpu7x:2x2x1
jax: 0.10.0
libtpu: 0.0.40
codegen_flags: <defaults>
</compile_context>

<pallas_src>
import functools

import jax
import jax.numpy as jnp
from jax import lax
from jax.experimental import pallas as pl
from jax.experimental.pallas import tpu as pltpu

_LANE = 128
_SUBLANE = 8


def _round_up(x, m):
    return (x + m - 1) // m * m


# ---------------------------------------------------------------------------
# Kernel: one grid step = one chunk of `tc` recurrent timesteps.
# ---------------------------------------------------------------------------
def _kaarma_chunk_kernel(du, tc, t_total,
                         as_ref, au_ref, inp_ref, state0_ref,
                         s_t_ref, c_ref, pw_ref, a_ref,
                         states_ref, state_scr):
    chunk = pl.program_id(0)

    @pl.when(chunk == 0)
    def _():
        state_scr[...] = state0_ref[...]          # prime the carried state

    a_s = as_ref[0]                               # SMEM scalars
    au_du = au_ref[0] * du                        # a_u * Du
    c_row = c_ref[...]                            # (1, M_pad): a_s|S|^2 + a_u|Phi|^2
    pw_row = pw_ref[...]                          # (1, M_pad): 2*a_u*sum(Phi)
    mxu_dtype = s_t_ref.dtype                     # f32 (default) or bf16 fast path

    def step(t, state):
        inp = inp_ref[t]                                            # (B_pad, 1)
        # 2*a_s*<state, S_m>: the 2*a_s factor is pre-folded into s_t_ref.
        cross2 = jnp.dot(state.astype(mxu_dtype), s_t_ref[...],
                         preferred_element_type=jnp.float32)        # (B_pad, M_pad)
        st2 = jnp.sum(state * state, axis=1, keepdims=True)         # (B_pad, 1)
        # exponent = a_s*||state-S||^2 + a_u*||Phi-inp||^2, fully folded; the
        # single clamp at 0 only removes cancellation noise (assumes the usual
        # Gaussian-kernel regime a_s, a_u >= 0, as in the PyTorch module).
        expo = (a_s * st2 + au_du * (inp * inp) + c_row
                - cross2 - inp * pw_row)                             # (B_pad, M_pad)
        k = jnp.exp(-jnp.maximum(expo, 0.0))
        # new_state[b, d] = sum_m k[b, m] * A[m, d]   (MXU, f32 accumulate).
        # Padded k columns are nonzero; A's padded rows are exactly zero so they
        # contribute nothing (guaranteed in prepare_kernel_params).
        new_state = jnp.dot(k.astype(mxu_dtype), a_ref[...],
                            preferred_element_type=jnp.float32)     # (B_pad, Ds_pad)
        states_ref[t] = new_state                                   # lane-dense store
        return new_state

    # Only the last chunk can be partial; skip padded timesteps there.
    steps = jnp.minimum(tc, t_total - chunk * tc)
    state_scr[...] = lax.fori_loop(0, steps, step, state_scr[...])


# ---------------------------------------------------------------------------
# Wrappers
# ---------------------------------------------------------------------------
def prepare_kernel_params(params, mxu_dtype=jnp.float32):
    """Pad / transpose the KAARMA memory once and fold scalars into vectors.

    mxu_dtype defaults to f32 (exact; the two matmuls are latency-bound at these
    shapes so bf16 buys nothing).  bf16 is an opt-in fast path for very large
    dictionaries; note it introduces small inconsistency in the expanded
    distance (masked by the exponent clamp) that compounds over long sequences.
    """
    S = jnp.asarray(params["S"], jnp.float32)        # (M, Ds)
    Phi = jnp.asarray(params["Phi"], jnp.float32)    # (M, Du)
    A = jnp.asarray(params["A"], jnp.float32)        # (M, Ds)
    a_s = jnp.asarray(params["_as"], jnp.float32).reshape(())
    a_u = jnp.asarray(params["_au"], jnp.float32).reshape(())
    M, Ds = S.shape
    Du = Phi.shape[1]
    M_pad = _round_up(M, _LANE)
    Ds_pad = _round_up(Ds, _LANE)

    # Padded rows/cols of A MUST be exactly zero: the padded kernel columns are
    # nonzero and only A's zero rows keep them out of new_state.  Do not
    # quantize / perturb A_p's padding.
    S_p = jnp.pad(S, ((0, M_pad - M), (0, Ds_pad - Ds)))
    A_p = jnp.pad(A, ((0, M_pad - M), (0, Ds_pad - Ds)))

    s2 = jnp.sum(S_p * S_p, axis=1)[None, :]                              # (1, M_pad)
    phi2 = jnp.pad(jnp.sum(Phi * Phi, axis=1), (0, M_pad - M))[None, :]   # (1, M_pad)
    phis = jnp.pad(jnp.sum(Phi, axis=1), (0, M_pad - M))[None, :]         # (1, M_pad)

    return {
        # (Ds_pad, M_pad), MXU-ready layout with 2*a_s folded in.
        "S_T2as": ((2.0 * a_s) * S_p).T.astype(mxu_dtype),
        "A": A_p.astype(mxu_dtype),                              # (M_pad, Ds_pad)
        "c": (a_s * s2 + a_u * phi2).astype(jnp.float32),        # (1, M_pad)
        "pw": (2.0 * a_u * phis).astype(jnp.float32),            # (1, M_pad)
        "_as": a_s.reshape(1),
        "_au": a_u.reshape(1),
        "initial_state": jnp.asarray(params["initial_state"], jnp.float32),
        "du": int(Du),
        "ds": int(Ds),
    }


@functools.partial(jax.jit, static_argnames=("du", "tc", "t_total"))
def _run_sequence(inp_seq_p, state0_p, s_t2as, c_vec, pw_vec, a_mat, a_s, a_u,
                  *, du, tc, t_total):
    T_pad, B_pad, _ = inp_seq_p.shape
    Ds_pad = state0_p.shape[1]
    num_chunks = T_pad // tc

    kernel = functools.partial(_kaarma_chunk_kernel, float(du), int(tc), int(t_total))
    # TODO(synk): for very large dictionaries M (v7x: 64 MiB VMEM), add an inner
    # loop tiling M with an accumulator before committing the carried state.
    # TODO(synk): when running many independent sequences, add a leading
    # "parallel" grid axis (or pack them into B) to use v7x's second TensorCore
    # and fill more MXU rows.
    return pl.pallas_call(
        kernel,
        out_shape=jax.ShapeDtypeStruct((T_pad, B_pad, Ds_pad), jnp.float32),
        grid_spec=pltpu.PrefetchScalarGridSpec(
            num_scalar_prefetch=0,
            grid=(num_chunks,),
            in_specs=[
                pl.BlockSpec(memory_space=pltpu.MemorySpace.SMEM),    # _as
                pl.BlockSpec(memory_space=pltpu.MemorySpace.SMEM),    # _au
                pl.BlockSpec((tc, B_pad, 1), lambda i: (i, 0, 0)),    # inp chunk
                pl.BlockSpec(memory_space=pltpu.MemorySpace.VMEM),    # state0 (resident)
                pl.BlockSpec(memory_space=pltpu.MemorySpace.VMEM),    # (2*a_s*S)^T
                pl.BlockSpec(memory_space=pltpu.MemorySpace.VMEM),    # c row
                pl.BlockSpec(memory_space=pltpu.MemorySpace.VMEM),    # pw row
                pl.BlockSpec(memory_space=pltpu.MemorySpace.VMEM),    # A (resident)
            ],
            out_specs=pl.BlockSpec((tc, B_pad, Ds_pad), lambda i: (i, 0, 0)),
            scratch_shapes=[pltpu.VMEM((B_pad, Ds_pad), jnp.float32)],  # carried state
        ),
        compiler_params=pltpu.CompilerParams(
            dimension_semantics=("arbitrary",),          # time is sequential
            vmem_limit_bytes=32 * 1024 * 1024,
        ),
    )(a_s, a_u, inp_seq_p, state0_p, s_t2as, c_vec, pw_vec, a_mat)


def kernel_node_apply_sequence(inp_seq, state0, prepared, time_chunk=128):
    """Run T KAARMA steps fused in one pallas_call (chunked time grid).

    inp_seq: (T, B) scalar inputs; state0: (B, Ds) or None (uses initial_state).
    Returns (outs (T, B), states (T, B, Ds)).
    """
    inp_seq = jnp.asarray(inp_seq, jnp.float32)
    T, B = inp_seq.shape
    ds = prepared["ds"]
    Ds_pad = prepared["A"].shape[1]
    B_pad = _round_up(B, _SUBLANE)

    if state0 is None:
        state0 = jnp.tile(prepared["initial_state"], (B, 1))
    state0 = jnp.asarray(state0, jnp.float32)

    tc = max(1, min(int(time_chunk), T))
    T_pad = _round_up(T, tc)

    inp_p = jnp.pad(inp_seq, ((0, T_pad - T), (0, B_pad - B)))[..., None]  # (T_pad,B_pad,1)
    state0_p = jnp.pad(state0, ((0, B_pad - B), (0, Ds_pad - ds)))         # (B_pad,Ds_pad)

    states = _run_sequence(inp_p, state0_p, prepared["S_T2as"], prepared["c"],
                           prepared["pw"], prepared["A"],
                           prepared["_as"], prepared["_au"],
                           du=prepared["du"], tc=tc, t_total=T)
    states = states[:T, :B, :ds]           # crop time / batch / state padding
    outs = states[:, :, ds - 1]            # out = new_state[:, -1] per step
    return outs, states


def kernel_node_apply(inp, state, prepared):
    """Single-step forward mirroring KernelNode.forward(inp, state)."""
    outs, states = kernel_node_apply_sequence(jnp.asarray(inp)[None, :], state, prepared)
    return outs[0], states[0]


# TODO(synk): update_memory() grows S/Phi/A with data-dependent shapes
# (dictionary growth); that has no static-shape Pallas equivalent and is left out.


# ---------------------------------------------------------------------------
# Pure-JAX reference (direct transcription of the PyTorch forward)
# ---------------------------------------------------------------------------
def _reference_step(inp, state, S, Phi, A, a_s, a_u):
    d_s = jnp.sum((S[None, :, :] - state[:, None, :]) ** 2, axis=2)      # (B, M)
    d_u = jnp.sum((Phi[None, :, :] - inp[:, None, None]) ** 2, axis=2)   # (B, M)
    k = jnp.exp(-a_s * d_s) * jnp.exp(-a_u * d_u)
    new_state = k @ A
    return new_state[:, -1], new_state


def _reference_sequence(inp_seq, state0, S, Phi, A, a_s, a_u):
    outs, states = [], []
    state = state0
    for t in range(inp_seq.shape[0]):
        out, state = _reference_step(inp_seq[t], state, S, Phi, A, a_s, a_u)
        outs.append(out)
        states.append(state)
    return jnp.stack(outs), jnp.stack(states)


if __name__ == "__main__":
    B, M, Ds, Du, T = 4, 8, 16, 4, 20
    key = jax.random.PRNGKey(0)
    k1, k2, k3, k4, k5 = jax.random.split(key, 5)

    params = {
        "_as": jnp.array([0.05], dtype=jnp.float32),
        "_au": jnp.array([0.10], dtype=jnp.float32),
        "initial_state": jax.random.normal(k1, (1, Ds), dtype=jnp.float32),
        "S": jax.random.normal(k2, (M, Ds), dtype=jnp.float32),
        "Phi": jax.random.normal(k3, (M, Du), dtype=jnp.float32),
        "A": jax.random.normal(k4, (M, Ds), dtype=jnp.float32),
    }
    inp_seq = jax.random.normal(k5, (T, B), dtype=jnp.float32)
    state0 = jnp.tile(params["initial_state"], (B, 1))

    ref_out0, ref_ns0 = _reference_step(
        inp_seq[0], state0, params["S"], params["Phi"], params["A"],
        params["_as"][0], params["_au"][0])
    ref_outs, ref_states = _reference_sequence(
        inp_seq, state0, params["S"], params["Phi"], params["A"],
        params["_as"][0], params["_au"][0])

    # --- default f32 MXU operands: reference-parity path ---
    prep = prepare_kernel_params(params)            # mxu_dtype=f32

    out1, ns1 = kernel_node_apply(inp_seq[0], None, prep)          # state=None path
    outs_a, states_a = kernel_node_apply_sequence(inp_seq, state0, prep)               # 1 chunk
    outs_b, states_b = kernel_node_apply_sequence(inp_seq, state0, prep, time_chunk=8)  # 3 chunks (last partial)
    jax.block_until_ready((out1, ns1, outs_a, states_a, outs_b, states_b))

    assert jnp.allclose(ns1, ref_ns0, rtol=2e-2, atol=2e-3)
    assert jnp.allclose(out1, ref_out0, rtol=2e-2, atol=2e-3)
    assert jnp.allclose(states_a, ref_states, rtol=2e-2, atol=2e-3)
    assert jnp.allclose(outs_a, ref_outs, rtol=2e-2, atol=2e-3)
    assert jnp.allclose(states_b, ref_states, rtol=2e-2, atol=2e-3)
    assert jnp.allclose(outs_b, ref_outs, rtol=2e-2, atol=2e-3)

    # --- optional bf16 MXU operand fast path (for large dictionaries) ---
    prep_bf16 = prepare_kernel_params(params, mxu_dtype=jnp.bfloat16)
    outs_bf16, states_bf16 = kernel_node_apply_sequence(inp_seq, state0, prep_bf16)
    jax.block_until_ready((outs_bf16, states_bf16))
    assert bool(jnp.all(jnp.isfinite(states_bf16)))
    assert bool(jnp.all(jnp.isfinite(outs_bf16)))

    print("KERNEL_OK")
</pallas_src>

<mosaic_0001>
module attributes {stable_mosaic.version = 11 : i64} {
  func.func @_kaarma_chunk_kernel(%arg0: i32, %arg1: memref<1xf32, #tpu.memory_space<smem>>, %arg2: memref<1xf32, #tpu.memory_space<smem>>, %arg3: memref<1x8x1xf32, #tpu.memory_space<vmem>>, %arg4: memref<8x128xf32, #tpu.memory_space<vmem>>, %arg5: memref<128x128xf32, #tpu.memory_space<vmem>>, %arg6: memref<1x128xf32, #tpu.memory_space<vmem>>, %arg7: memref<1x128xf32, #tpu.memory_space<vmem>>, %arg8: memref<128x128xf32, #tpu.memory_space<vmem>>, %arg9: memref<1x8x128xf32, #tpu.memory_space<vmem>>, %arg10: memref<8x128xf32, #tpu.memory_space<vmem>>) attributes {dimension_semantics = [#tpu.dimension_semantics<arbitrary>], iteration_bounds = array<i64: 1>, scalar_prefetch = 0 : i64, scratch_operands = 1 : i64, tpu.core_type = #tpu.core_type<tc>, window_params = [{transform_indices = @transform_0, window_bounds = array<i64: 1>}, {transform_indices = @transform_1, window_bounds = array<i64: 1>}, {transform_indices = @transform_2, window_bounds = array<i64: 1, 8, 1>}, {pipeline_mode = #tpu.pipeline_mode<synchronous>, transform_indices = @transform_3, window_bounds = array<i64: 8, 128>}, {pipeline_mode = #tpu.pipeline_mode<synchronous>, transform_indices = @transform_4, window_bounds = array<i64: 128, 128>}, {pipeline_mode = #tpu.pipeline_mode<synchronous>, transform_indices = @transform_5, window_bounds = array<i64: 1, 128>}, {pipeline_mode = #tpu.pipeline_mode<synchronous>, transform_indices = @transform_6, window_bounds = array<i64: 1, 128>}, {pipeline_mode = #tpu.pipeline_mode<synchronous>, transform_indices = @transform_7, window_bounds = array<i64: 128, 128>}, {transform_indices = @transform_8, window_bounds = array<i64: 1, 8, 128>}]} {
    %c0_i32 = arith.constant 0 : i32
    %0 = arith.cmpi eq, %arg0, %c0_i32 : i32
    %1 = arith.extui %0 : i1 to i32
    %c0_i32_0 = arith.constant 0 : i32
    %2 = arith.cmpi ne, %1, %c0_i32_0 : i32
    scf.if %2 {
      %c0_14 = arith.constant 0 : index
      %c0_15 = arith.constant 0 : index
      %16 = vector.load %arg4[%c0_14, %c0_15] : memref<8x128xf32, #tpu.memory_space<vmem>>, vector<8x128xf32>
      %c0_16 = arith.constant 0 : index
      %c0_17 = arith.constant 0 : index
      %17 = vector.load %arg10[%c0_16, %c0_17] : memref<8x128xf32, #tpu.memory_space<vmem>>, vector<8x128xf32>
      tpu.vector_store %arg10[%c0_16, %c0_17], %16 {strides = array<i32>} : memref<8x128xf32, #tpu.memory_space<vmem>>, vector<8x128xf32>,
    } else {
    }
    %c0 = arith.constant 0 : index
    %3 = memref.load %arg1[%c0] : memref<1xf32, #tpu.memory_space<smem>>
    %c0_1 = arith.constant 0 : index
    %4 = memref.load %arg2[%c0_1] : memref<1xf32, #tpu.memory_space<smem>>
    %cst = arith.constant 4.000000e+00 : f32
    %5 = arith.mulf %4, %cst : f32
    %c0_2 = arith.constant 0 : index
    %c0_3 = arith.constant 0 : index
    %6 = vector.load %arg6[%c0_2, %c0_3] : memref<1x128xf32, #tpu.memory_space<vmem>>, vector<1x128xf32>
    %c0_4 = arith.constant 0 : index
    %c0_5 = arith.constant 0 : index
    %7 = vector.load %arg7[%c0_4, %c0_5] : memref<1x128xf32, #tpu.memory_space<vmem>>, vector<1x128xf32>
    %c1_i32 = arith.constant 1 : i32
    %8 = arith.muli %arg0, %c1_i32 : i32
    %c1_i32_6 = arith.constant 1 : i32
    %9 = arith.subi %c1_i32_6, %8 : i32
    %c1_i32_7 = arith.constant 1 : i32
    %10 = arith.minsi %c1_i32_7, %9 : i32
    %c0_8 = arith.constant 0 : index
    %c0_9 = arith.constant 0 : index
    %11 = vector.load %arg10[%c0_8, %c0_9] : memref<8x128xf32, #tpu.memory_space<vmem>>, vector<8x128xf32>
    %c0_i32_10 = arith.constant 0 : i32
    %12 = arith.subi %10, %c0_i32_10 : i32
    %13 = arith.addi %c0_i32_10, %12 : i32
    %c1_i32_11 = arith.constant 1 : i32
    %14 = scf.for %arg11 = %c0_i32_10 to %13 step %c1_i32_11 iter_args(%arg12 = %11) -> (vector<8x128xf32>)  : i32 {
      %16 = arith.index_cast %arg11 : i32 to index
      %c0_14 = arith.constant 0 : index
      %c0_15 = arith.constant 0 : index
      %17 = vector.load %arg3[%16, %c0_14, %c0_15] : memref<1x8x1xf32, #tpu.memory_space<vmem>>, vector<1x8x1xf32>
      %18 = vector.shape_cast %17 : vector<1x8x1xf32> to vector<8x1xf32>
      %c0_16 = arith.constant 0 : index
      %c0_17 = arith.constant 0 : index
      %19 = vector.load %arg5[%c0_16, %c0_17] : memref<128x128xf32, #tpu.memory_space<vmem>>, vector<128x128xf32>
      %cst_18 = arith.constant dense<0.000000e+00> : vector<8x128xf32>
      %20 = tpu.matmul %arg12, %19, %cst_18 {dimension_numbers = #tpu.dot_dimension_numbers<[1], [0], [0], [1], [0, 0, 1, 1], [], []>} : vector<8x128xf32>, vector<128x128xf32>, vector<8x128xf32> -> vector<8x128xf32>
      %21 = arith.mulf %arg12, %arg12 : vector<8x128xf32>
      %cst_19 = arith.constant dense<0.000000e+00> : vector<8xf32>
      %22 = vector.multi_reduction <add>, %21, %cst_19 [1] : vector<8x128xf32> to vector<8xf32>
      %23 = vector.shape_cast %22 : vector<8xf32> to vector<8x1xf32>
      %24 = vector.broadcast %3 : f32 to vector<8x1xf32>
      %25 = arith.mulf %24, %23 : vector<8x1xf32>
      %26 = arith.mulf %18, %18 : vector<8x1xf32>
      %27 = vector.broadcast %5 : f32 to vector<8x1xf32>
      %28 = arith.mulf %27, %26 : vector<8x1xf32>
      %29 = arith.addf %25, %28 : vector<8x1xf32>
      %30 = vector.broadcast %29 : vector<8x1xf32> to vector<8x128xf32>
      %31 = vector.broadcast %6 : vector<1x128xf32> to vector<8x128xf32>
      %32 = arith.addf %30, %31 : vector<8x128xf32>
      %33 = arith.subf %32, %20 : vector<8x128xf32>
      %34 = vector.broadcast %18 : vector<8x1xf32> to vector<8x128xf32>
      %35 = vector.broadcast %7 : vector<1x128xf32> to vector<8x128xf32>
      %36 = arith.mulf %34, %35 : vector<8x128xf32>
      %37 = arith.subf %33, %36 : vector<8x128xf32>
      %cst_20 = arith.constant 0.000000e+00 : f32
      %38 = vector.broadcast %cst_20 : f32 to vector<8x128xf32>
      %39 = arith.maximumf %37, %38 : vector<8x128xf32>
      %cst_21 = arith.constant 0.000000e+00 : f32
      %40 = vector.broadcast %cst_21 : f32 to vector<8x128xf32>
      %41 = arith.subf %40, %39 : vector<8x128xf32>
      %42 = math.exp %41 : vector<8x128xf32>
      %c0_22 = arith.constant 0 : index
      %c0_23 = arith.constant 0 : index
      %43 = vector.load %arg8[%c0_22, %c0_23] : memref<128x128xf32, #tpu.memory_space<vmem>>, vector<128x128xf32>
      %cst_24 = arith.constant dense<0.000000e+00> : vector<8x128xf32>
      %44 = tpu.matmul %42, %43, %cst_24 {dimension_numbers = #tpu.dot_dimension_numbers<[1], [0], [0], [1], [0, 0, 1, 1], [], []>} : vector<8x128xf32>, vector<128x128xf32>, vector<8x128xf32> -> vector<8x128xf32>
      %45 = arith.index_cast %arg11 : i32 to index
      %c0_25 = arith.constant 0 : index
      %c0_26 = arith.constant 0 : index
      %46 = vector.load %arg9[%45, %c0_25, %c0_26] : memref<1x8x128xf32, #tpu.memory_space<vmem>>, vector<1x8x128xf32>
      %47 = vector.shape_cast %46 : vector<1x8x128xf32> to vector<8x128xf32>
      %48 = vector.shape_cast %44 : vector<8x128xf32> to vector<1x8x128xf32>
      tpu.vector_store %arg9[%45, %c0_25, %c0_26], %48 {strides = array<i32>} : memref<1x8x128xf32, #tpu.memory_space<vmem>>, vector<1x8x128xf32>,
      scf.yield %44 : vector<8x128xf32>
    }
    %c0_12 = arith.constant 0 : index
    %c0_13 = arith.constant 0 : index
    %15 = vector.load %arg10[%c0_12, %c0_13] : memref<8x128xf32, #tpu.memory_space<vmem>>, vector<8x128xf32>
    tpu.vector_store %arg10[%c0_12, %c0_13], %14 {strides = array<i32>} : memref<8x128xf32, #tpu.memory_space<vmem>>, vector<8x128xf32>,
    return
  }
  func.func @transform_0(%arg0: i32) -> i32 {
    %c0_i32 = arith.constant 0 : i32
    %c0_i32_0 = arith.constant 0 : i32
    return %c0_i32 : i32
  }
  func.func @transform_1(%arg0: i32) -> i32 {
    %c0_i32 = arith.constant 0 : i32
    %c0_i32_0 = arith.constant 0 : i32
    return %c0_i32 : i32
  }
  func.func @transform_2(%arg0: i32) -> (i32, i32, i32) {
    %c0_i32 = arith.constant 0 : i32
    %c0_i32_0 = arith.constant 0 : i32
    %c0_i32_1 = arith.constant 0 : i32
    return %arg0, %c0_i32, %c0_i32_0 : i32, i32, i32
  }
  func.func @transform_3(%arg0: i32) -> (i32, i32) {
    %c0_i32 = arith.constant 0 : i32
    %c0_i32_0 = arith.constant 0 : i32
    %c0_i32_1 = arith.constant 0 : i32
    return %c0_i32, %c0_i32_0 : i32, i32
  }
  func.func @transform_4(%arg0: i32) -> (i32, i32) {
    %c0_i32 = arith.constant 0 : i32
    %c0_i32_0 = arith.constant 0 : i32
    %c0_i32_1 = arith.constant 0 : i32
    return %c0_i32, %c0_i32_0 : i32, i32
  }
  func.func @transform_5(%arg0: i32) -> (i32, i32) {
    %c0_i32 = arith.constant 0 : i32
    %c0_i32_0 = arith.constant 0 : i32
    %c0_i32_1 = arith.constant 0 : i32
    return %c0_i32, %c0_i32_0 : i32, i32
  }
  func.func @transform_6(%arg0: i32) -> (i32, i32) {
    %c0_i32 = arith.constant 0 : i32
    %c0_i32_0 = arith.constant 0 : i32
    %c0_i32_1 = arith.constant 0 : i32
    return %c0_i32, %c0_i32_0 : i32, i32
  }
  func.func @transform_7(%arg0: i32) -> (i32, i32) {
    %c0_i32 = arith.constant 0 : i32
    %c0_i32_0 = arith.constant 0 : i32
    %c0_i32_1 = arith.constant 0 : i32
    return %c0_i32, %c0_i32_0 : i32, i32
  }
  func.func @transform_8(%arg0: i32) -> (i32, i32, i32) {
    %c0_i32 = arith.constant 0 : i32
    %c0_i32_0 = arith.constant 0 : i32
    %c0_i32_1 = arith.constant 0 : i32
    return %arg0, %c0_i32, %c0_i32_0 : i32, i32, i32
  }
}

</mosaic_0001>

<llo_original>
// kernel: _run_sequence.1
$region0: #{_run_sequence.1}
  #allocation0 [shape = 'u32[]', space=smem, size = 0x4, offset = 0x4, fixed_abs, tag = 'smem constant byte address 0x4 - core index']
  #allocation1 [shape = 'u32[144,128]{1,0:T(1,128)}', space=vmem, size = 0x12000, scoped, tag = 'internal scratch']
  #allocation2 [shape = 'f32[8,128]{1,0:T(8,128)}', space=vmem, size = 0x1000, scoped, tag = 'scratch operand']
  #allocation3 [shape = 'f32[1]{0:T(128)S(6)}', space=smem, size = 0x200, scoped, tag = 'scoped memory for _run_sequence.1']
  #allocation4 [shape = 'f32[1]{0:T(128)S(6)}', space=smem, size = 0x200, scoped, tag = 'scoped memory for _run_sequence.1']
  %s0 = inlined_call_operand.<no memory space> [shape: f32[1], index: 0, kind: input, shape index: {}]
  %s1 = inlined_call_operand.<no memory space> [shape: f32[1], index: 1, kind: input, shape index: {}]
  %s2 = inlined_call_operand.vmem [shape: f32[1,8,1], index: 2, kind: input, shape index: {}]
  %s3 = inlined_call_operand.vmem [shape: f32[8,128], index: 3, kind: input, shape index: {}]
  %s4 = inlined_call_operand.hbm [shape: f32[128,128], index: 4, kind: input, shape index: {}]
  %s5 = inlined_call_operand.vmem [shape: f32[1,128], index: 5, kind: input, shape index: {}]
  %s6 = inlined_call_operand.vmem [shape: f32[1,128], index: 6, kind: input, shape index: {}]
  %s7 = inlined_call_operand.hbm [shape: f32[128,128], index: 7, kind: input, shape index: {}]
  %s8 = inlined_call_operand.hbm [shape: f32[1,8,128], index: 8, kind: output, shape index: {}]
  %s9 = sld [smem:[#allocation0]]
  $region61: #{_run_sequence.1} parent=0
    _
  %s11 = ssub.s32 1, %s9
  %s12 = scalar_select 0, %s11, %s9
  %13 = sst [smem:[#allocation3]] %s0
  %14 = sst [smem:[#allocation4]] %s1
  $region1: #{_run_sequence.1} parent=0
    #allocation5 [shape = 'u8[65536]{0}', space=vmem, size = 0x10000, scoped, tag = 'input window, operand 4, single buffered']
    #allocation6 [shape = 's32[1]{0}', space=sflag, size = 0x4, scoped, tag = 'scoped memory for _run_sequence.1']
    #allocation7 [shape = 's32[1]{0}', space=sflag, size = 0x4, scoped, tag = 'scoped memory for _run_sequence.1']
    #allocation8 [shape = 'u8[65536]{0}', space=vmem, size = 0x10000, scoped, tag = 'input window, operand 7, single buffered']
    #allocation9 [shape = 's32[1]{0}', space=sflag, size = 0x4, scoped, tag = 'scoped memory for _run_sequence.1']
    #allocation10 [shape = 'u8[4096]{0}', space=vmem, size = 0x1000, scoped, tag = 'output window, operand 0, single buffered']
    %15 = vsyncpa [#allocation6], 0
    %16 = vsyncpa [#allocation9], 0
    %17 = vsyncpa [#allocation7], 0
    // Predicated region
    $region2: #{_run_sequence.1} parent=1 // pred_check
      _
    $region3: #{_run_sequence.1} parent=1 // pred_check_branch
      %19 = sbr.rel (0) target = $region5
    $region4: #{_run_sequence.1} parent=1 // pred_region
      _
    $region5: #{_run_sequence.1} parent=1 // pred_fallthru
      _
    // Predicated region
    $region6: #{_run_sequence.1} parent=1 // pred_check
      _
    $region7: #{_run_sequence.1} parent=1 // pred_check_branch
      %21 = sbr.rel (0) target = $region9
    $region8: #{_run_sequence.1} parent=1 // pred_region
      _
    $region9: #{_run_sequence.1} parent=1 // pred_fallthru
      _
    // Predicated region
    $region10: #{_run_sequence.1} parent=1 // pred_check
      _
    $region11: #{_run_sequence.1} parent=1 // pred_check_branch
      %23 = sbr.rel (0) target = $region13
    $region12: #{_run_sequence.1} parent=1 // pred_region
      _
    $region13: #{_run_sequence.1} parent=1 // pred_fallthru
      _
    // Predicated region
    $region14: #{_run_sequence.1} parent=1 // pred_check
      _
    $region15: #{_run_sequence.1} parent=1 // pred_check_branch
      %25 = sbr.rel (0) target = $region17
    $region16: #{_run_sequence.1} parent=1 // pred_region
      _
    $region17: #{_run_sequence.1} parent=1 // pred_fallthru
      _
    // Predicated region
    $region18: #{_run_sequence.1} parent=1 // pred_check
      _
    $region19: #{_run_sequence.1} parent=1 // pred_check_branch
      %27 = sbr.rel (0) target = $region21
    $region20: #{_run_sequence.1} parent=1 // pred_region
      %s29 = ssub.s32 2048, 2048
      %30 = vsyncadd [#allocation6], %s29
      %s31 = sshll.u32 [#allocation5], 4
      %s32 = int_to_ptr.vmem [resolvable:$true] %s31
      %37 = dma.hbm_to_vmem [thread:$0]  %s4, 2048, %s32, [#allocation6], 128, 128, 8
    $region21: #{_run_sequence.1} parent=1 // pred_fallthru
      _
    // Predicated region
    $region22: #{_run_sequence.1} parent=1 // pred_check
      _
    $region23: #{_run_sequence.1} parent=1 // pred_check_branch
      %39 = sbr.rel (0) target = $region25
    $region24: #{_run_sequence.1} parent=1 // pred_region
      _
    $region25: #{_run_sequence.1} parent=1 // pred_fallthru
      _
    // Predicated region
    $region26: #{_run_sequence.1} parent=1 // pred_check
      _
    $region27: #{_run_sequence.1} parent=1 // pred_check_branch
      %41 = sbr.rel (0) target = $region29
    $region28: #{_run_sequence.1} parent=1 // pred_region
      _
    $region29: #{_run_sequence.1} parent=1 // pred_fallthru
      _
    // Predicated region
    $region30: #{_run_sequence.1} parent=1 // pred_check
      _
    $region31: #{_run_sequence.1} parent=1 // pred_check_branch
      %43 = sbr.rel (0) target = $region33
    $region32: #{_run_sequence.1} parent=1 // pred_region
      %s45 = ssub.s32 2048, 2048
      %46 = vsyncadd [#allocation9], %s45
      %s47 = sshll.u32 [#allocation8], 4
      %s48 = int_to_ptr.vmem [resolvable:$true] %s47
      %53 = dma.hbm_to_vmem [thread:$0]  %s7, 2048, %s48, [#allocation9], 128, 128, 8
    $region33: #{_run_sequence.1} parent=1 // pred_fallthru
      _
    // Predicated region
    $region34: #{_run_sequence.1} parent=1 // pred_check
      _
    $region35: #{_run_sequence.1} parent=1 // pred_check_branch
      %55 = sbr.rel (0) target = $region37
    $region36: #{_run_sequence.1} parent=1 // pred_region
      %56 = dma.done [#allocation6], 2048
    $region37: #{_run_sequence.1} parent=1 // pred_fallthru
      _
    // Predicated region
    $region38: #{_run_sequence.1} parent=1 // pred_check
      _
    $region39: #{_run_sequence.1} parent=1 // pred_check_branch
      %58 = sbr.rel (0) target = $region41
    $region40: #{_run_sequence.1} parent=1 // pred_region
      %59 = dma.done [#allocation9], 2048
    $region41: #{_run_sequence.1} parent=1 // pred_fallthru
      _
    %p60 = scmp.eq.s32.totalorder 0, 0
    // Predicated region
    $region42: #{_run_sequence.1} parent=1 // pred_check
      %p61 = pneg %p60
    $region43: #{_run_sequence.1} parent=1 // pred_check_branch
      %63 = sbr.rel (%p61) target = $region45
    $region44: #{_run_sequence.1} parent=1 // pred_region
      %v64 = vld [vmem:[%s3] sm:$0xff]
      %65 = vst [vmem:[#allocation2] sm:$0xff] %v64
    $region45: #{_run_sequence.1} parent=1 // pred_fallthru
      _
    %s66 = sld [smem:[#allocation3]]
    %s67 = sld [smem:[#allocation4]]
    %s68 = smul.f32 %s67, 4.0
    %v69 = vld [vmem:[%s5] sm:$0x1]
    %v70 = vld [vmem:[%s6] sm:$0x1]
    %s71 = ssub.s32 1, 0
    %p72 = scmp.lt.s32.totalorder %s71, 1
    %s73 = scalar_select %p72, %s71, 1
    %v74 = vld [vmem:[#allocation2] sm:$0xff]
    // While loop
    $region46: #{_run_sequence.1} parent=1 // loop_pre_header
      _
    $region47: #{_run_sequence.1} parent=1 // loop_header
      %s76 = sphi 0, %s78
      %p77 = scmp.ge.s32.totalorder %s76, %s73
      %v81 = vphi %v74, %v293
    $region48: #{_run_sequence.1} parent=1 // loop_header_branch
      %80 = sbr.rel (%p77) target = $region52
    $region49: #{_run_sequence.1} parent=1 // loop_body
      %s82 = smul.u32 %s76, 8
      %s83 = scalar_lea.vmem %s2, %s82
      %v84 = vld [vmem:[%s83] sm:$0xff]
      %v85 = vld [vmem:[#allocation5] sm:$0xff]
      %v86 = vld [vmem:[#allocation5 + $0x8] sm:$0xff]
      %v87 = vld [vmem:[#allocation5 + $0x10] sm:$0xff]
      %v88 = vld [vmem:[#allocation5 + $0x18] sm:$0xff]
      %v89 = vld [vmem:[#allocation5 + $0x20] sm:$0xff]
      %v90 = vld [vmem:[#allocation5 + $0x28] sm:$0xff]
      %v91 = vld [vmem:[#allocation5 + $0x30] sm:$0xff]
      %v92 = vld [vmem:[#allocation5 + $0x38] sm:$0xff]
      %v93 = vld [vmem:[#allocation5 + $0x40] sm:$0xff]
      %v94 = vld [vmem:[#allocation5 + $0x48] sm:$0xff]
      %v95 = vld [vmem:[#allocation5 + $0x50] sm:$0xff]
      %v96 = vld [vmem:[#allocation5 + $0x58] sm:$0xff]
      %v97 = vld [vmem:[#allocation5 + $0x60] sm:$0xff]
      %v98 = vld [vmem:[#allocation5 + $0x68] sm:$0xff]
      %v99 = vld [vmem:[#allocation5 + $0x70] sm:$0xff]
      %v100 = vld [vmem:[#allocation5 + $0x78] sm:$0xff]
      %101 = vmatprep.subr.mxu0 0.0
      %102 = vmatpush1.msra.mxu0 %v85
      %103 = vmatprep.subr.mxu0 0.0
      %104 = vmatpush1.msra.mxu0 %v86
      %105 = vmatprep.subr.mxu0 0.0
      %106 = vmatpush1.msra.mxu0 %v87
      %107 = vmatprep.subr.mxu0 0.0
      %108 = vmatpush1.msra.mxu0 %v88
      %109 = vmatprep.subr.mxu0 0.0
      %110 = vmatpush1.msra.mxu0 %v89
      %111 = vmatprep.subr.mxu0 0.0
      %112 = vmatpush1.msra.mxu0 %v90
      %113 = vmatprep.subr.mxu0 0.0
      %114 = vmatpush1.msra.mxu0 %v91
      %115 = vmatprep.subr.mxu0 0.0
      %116 = vmatpush1.msra.mxu0 %v92
      %117 = vmatprep.subr.mxu0 0.0
      %118 = vmatpush1.msra.mxu0 %v93
      %119 = vmatprep.subr.mxu0 0.0
      %120 = vmatpush1.msra.mxu0 %v94
      %121 = vmatprep.subr.mxu0 0.0
      %122 = vmatpush1.msra.mxu0 %v95
      %123 = vmatprep.subr.mxu0 0.0
      %124 = vmatpush1.msra.mxu0 %v96
      %125 = vmatprep.subr.mxu0 0.0
      %126 = vmatpush1.msra.mxu0 %v97
      %127 = vmatprep.subr.mxu0 0.0
      %128 = vmatpush1.msra.mxu0 %v98
      %129 = vmatprep.subr.mxu0 0.0
      %130 = vmatpush1.msra.mxu0 %v99
      %131 = vmatprep.subr.mxu0 0.0
      %132 = vmatpush1.msra.mxu0 %v100
      %133 = vmatprep.subr.mxu0 0.0
      %134 = vmatpush1.msra.mxu0 0.0
      %135 = vmatprep.subr.mxu0 0.0
      %136 = vmatpush1.msra.mxu0 0.0
      %137 = vmatprep.subr.mxu0 0.0
      %138 = vmatpush1.msra.mxu0 0.0
      %139 = vmatprep.subr.mxu0 0.0
      %140 = vmatpush1.msra.mxu0 0.0
      %141 = vmatprep.subr.mxu0 0.0
      %142 = vmatpush1.msra.mxu0 0.0
      %143 = vmatprep.subr.mxu0 0.0
      %144 = vmatpush1.msra.mxu0 0.0
      %145 = vmatprep.subr.mxu0 0.0
      %146 = vmatpush1.msra.mxu0 0.0
      %147 = vmatprep.subr.mxu0 0.0
      %148 = vmatpush1.msra.mxu0 0.0
      %149 = vmatprep.subr.mxu0 0.0
      %150 = vmatpush1.msra.mxu0 0.0
      %151 = vmatprep.subr.mxu0 0.0
      %152 = vmatpush1.msra.mxu0 0.0
      %153 = vmatprep.subr.mxu0 0.0
      %154 = vmatpush1.msra.mxu0 0.0
      %155 = vmatprep.subr.mxu0 0.0
      %156 = vmatpush1.msra.mxu0 0.0
      %157 = vmatprep.subr.mxu0 0.0
      %158 = vmatpush1.msra.mxu0 0.0
      %159 = vmatprep.subr.mxu0 0.0
      %160 = vmatpush1.msra.mxu0 0.0
      %161 = vmatprep.subr.mxu0 0.0
      %162 = vmatpush1.msra.mxu0 0.0
      %163 = vmatprep.subr.mxu0 0.0
      %164 = vmatpush1.msra.mxu0 0.0
      %165 = vmatprep.mubr.f32.mxu0 0.0
      %166 = vmatmul.mubr.f32.gmra.mrb[0].mxu0 %v81
      %v167 = vpop.f32.mrb[0].mxu0
      %v168 = vadd.f32 0.0, %v167
      %v169 = vpop.f32.mrb[0].mxu0
      %170 = vdwg.mxu0
      %v171 = vmul.f32 %v81, %v81
      %172 = vadd.xlane.f32.xlu0 %v171
      %v173 = vpop.xlane.xlu0 %172
      %v174 = vstv %s66
      %v175 = vmul.f32 %v174, %v173
      %v176 = vmul.f32 %v84, %v84
      %v177 = vstv %s68
      %v178 = vmul.f32 %v177, %v176
      %v179 = vadd.f32 %v175, %v178
      %181 = vset.pattern.permute.xlu0 0
      %182 = vperm.xlu0 %181, %v179
      %v183 = vpop.permute.xlu0 %182
      %v186 = vlaneseq
      %v187 = vshrl.u32 %v186, 7
      %v188 = vsub.s32 0, %v187
      %v189 = vrot.slane %v69, %v188
      %v191 = vadd.f32 %v183, %v189
      %v192 = vsub.f32 %v191, %v168
      %194 = vset.pattern.permute.xlu0 0
      %195 = vperm.xlu0 %194, %v84
      %v196 = vpop.permute.xlu0 %195
      %v199 = vlaneseq
      %v200 = vshrl.u32 %v199, 7
      %v201 = vsub.s32 0, %v200
      %v202 = vrot.slane %v70, %v201
      %v204 = vmul.f32 %v196, %v202
      %v205 = vsub.f32 %v192, %v204
      %v206 = vmax.f32 %v205, 0.0
      %v207 = vsub.f32 0.0, %v206
      %v208 = vmul.f32 %v207, 1.442695
      %v209 = vpow.pop %v208
      %v210 = vld [vmem:[#allocation8] sm:$0xff]
      %v211 = vld [vmem:[#allocation8 + $0x8] sm:$0xff]
      %v212 = vld [vmem:[#allocation8 + $0x10] sm:$0xff]
      %v213 = vld [vmem:[#allocation8 + $0x18] sm:$0xff]
      %v214 = vld [vmem:[#allocation8 + $0x20] sm:$0xff]
      %v215 = vld [vmem:[#allocation8 + $0x28] sm:$0xff]
      %v216 = vld [vmem:[#allocation8 + $0x30] sm:$0xff]
      %v217 = vld [vmem:[#allocation8 + $0x38] sm:$0xff]
      %v218 = vld [vmem:[#allocation8 + $0x40] sm:$0xff]
      %v219 = vld [vmem:[#allocation8 + $0x48] sm:$0xff]
      %v220 = vld [vmem:[#allocation8 + $0x50] sm:$0xff]
      %v221 = vld [vmem:[#allocation8 + $0x58] sm:$0xff]
      %v222 = vld [vmem:[#allocation8 + $0x60] sm:$0xff]
      %v223 = vld [vmem:[#allocation8 + $0x68] sm:$0xff]
      %v224 = vld [vmem:[#allocation8 + $0x70] sm:$0xff]
      %v225 = vld [vmem:[#allocation8 + $0x78] sm:$0xff]
      %226 = vmatprep.subr.mxu0 0.0
      %227 = vmatpush1.msra.mxu0 %v210
      %228 = vmatprep.subr.mxu0 0.0
      %229 = vmatpush1.msra.mxu0 %v211
      %230 = vmatprep.subr.mxu0 0.0
      %231 = vmatpush1.msra.mxu0 %v212
      %232 = vmatprep.subr.mxu0 0.0
      %233 = vmatpush1.msra.mxu0 %v213
      %234 = vmatprep.subr.mxu0 0.0
      %235 = vmatpush1.msra.mxu0 %v214
      %236 = vmatprep.subr.mxu0 0.0
      %237 = vmatpush1.msra.mxu0 %v215
      %238 = vmatprep.subr.mxu0 0.0
      %239 = vmatpush1.msra.mxu0 %v216
      %240 = vmatprep.subr.mxu0 0.0
      %241 = vmatpush1.msra.mxu0 %v217
      %242 = vmatprep.subr.mxu0 0.0
      %243 = vmatpush1.msra.mxu0 %v218
      %244 = vmatprep.subr.mxu0 0.0
      %245 = vmatpush1.msra.mxu0 %v219
      %246 = vmatprep.subr.mxu0 0.0
      %247 = vmatpush1.msra.mxu0 %v220
      %248 = vmatprep.subr.mxu0 0.0
      %249 = vmatpush1.msra.mxu0 %v221
      %250 = vmatprep.subr.mxu0 0.0
      %251 = vmatpush1.msra.mxu0 %v222
      %252 = vmatprep.subr.mxu0 0.0
      %253 = vmatpush1.msra.mxu0 %v223
      %254 = vmatprep.subr.mxu0 0.0
      %255 = vmatpush1.msra.mxu0 %v224
      %256 = vmatprep.subr.mxu0 0.0
      %257 = vmatpush1.msra.mxu0 %v225
      %258 = vmatprep.subr.mxu0 0.0
      %259 = vmatpush1.msra.mxu0 0.0
      %260 = vmatprep.subr.mxu0 0.0
      %261 = vmatpush1.msra.mxu0 0.0
      %262 = vmatprep.subr.mxu0 0.0
      %263 = vmatpush1.msra.mxu0 0.0
      %264 = vmatprep.subr.mxu0 0.0
      %265 = vmatpush1.msra.mxu0 0.0
      %266 = vmatprep.subr.mxu0 0.0
      %267 = vmatpush1.msra.mxu0 0.0
      %268 = vmatprep.subr.mxu0 0.0
      %269 = vmatpush1.msra.mxu0 0.0
      %270 = vmatprep.subr.mxu0 0.0
      %271 = vmatpush1.msra.mxu0 0.0
      %272 = vmatprep.subr.mxu0 0.0
      %273 = vmatpush1.msra.mxu0 0.0
      %274 = vmatprep.subr.mxu0 0.0
      %275 = vmatpush1.msra.mxu0 0.0
      %276 = vmatprep.subr.mxu0 0.0
      %277 = vmatpush1.msra.mxu0 0.0
      %278 = vmatprep.subr.mxu0 0.0
      %279 = vmatpush1.msra.mxu0 0.0
      %280 = vmatprep.subr.mxu0 0.0
      %281 = vmatpush1.msra.mxu0 0.0
      %282 = vmatprep.subr.mxu0 0.0
      %283 = vmatpush1.msra.mxu0 0.0
      %284 = vmatprep.subr.mxu0 0.0
      %285 = vmatpush1.msra.mxu0 0.0
      %286 = vmatprep.subr.mxu0 0.0
      %287 = vmatpush1.msra.mxu0 0.0
      %288 = vmatprep.subr.mxu0 0.0
      %289 = vmatpush1.msra.mxu0 0.0
      %290 = vmatprep.mubr.f32.mxu0 0.0
      %291 = vmatmul.mubr.f32.gmra.mrb[0].mxu0 %v209
      %v292 = vpop.f32.mrb[0].mxu0
      %v293 = vadd.f32 0.0, %v292
      %v294 = vpop.f32.mrb[0].mxu0
      %295 = vdwg.mxu0
      %s296 = scalar_lea.vmem [#allocation10], %s82
      %297 = vst [vmem:[%s296] sm:$0xff] %v293
    $region50: #{_run_sequence.1} parent=1 // loop_footer
      %s78 = sadd.s32 %s76, 1
    $region51: #{_run_sequence.1} parent=1 // loop_footer_branch
      %75 = sbr.rel target = $region47
    $region52: #{_run_sequence.1} parent=1 // loop_exit
      _
    %298 = vst [vmem:[#allocation2] sm:$0xff] %v81
    // Predicated region
    $region53: #{_run_sequence.1} parent=1 // pred_check
      _
    $region54: #{_run_sequence.1} parent=1 // pred_check_branch
      %300 = sbr.rel (0) target = $region56
    $region55: #{_run_sequence.1} parent=1 // pred_region
      %s302 = ssub.s32 128, 128
      %303 = vsyncadd [#allocation7], %s302
      %s305 = sshll.u32 [#allocation10], 4
      %s306 = int_to_ptr.vmem [resolvable:$true] %s305
      %308 = dma.vmem_to_hbm [thread:$0]  %s306, 128, %s8, [#allocation7]
    $region56: #{_run_sequence.1} parent=1 // pred_fallthru
      _
    // Predicated region
    $region57: #{_run_sequence.1} parent=1 // pred_check
      _
    $region58: #{_run_sequence.1} parent=1 // pred_check_branch
      %310 = sbr.rel (0) target = $region60
    $region59: #{_run_sequence.1} parent=1 // pred_region
      %311 = dma.done [#allocation7], 128
    $region60: #{_run_sequence.1} parent=1 // pred_fallthru
      _
    %312 = vsyncpa [#allocation6], 1
    %313 = vsyncpa [#allocation9], 1
    %314 = vsyncpa [#allocation7], 1

</llo_original>
